<compile_context>
chip_gen: v7x
topology: tpu7x:2x2x1
jax: 0.10.0
libtpu: 0.0.40
codegen_flags: <defaults>
</compile_context>

<pallas_src>
import functools

import jax
import jax.numpy as jnp
import numpy as np
from jax.experimental import pallas as pl
from jax.experimental.pallas import tpu as pltpu


def _gen_caps():
    """Generation-aware (per-block byte cap, vmem_limit_bytes)."""
    try:
        kind = jax.devices()[0].device_kind.lower()
    except Exception:
        kind = ""
    if "v6" in kind:
        # 128 MiB VMEM, 1.4 TB/s HBM: big tiles, raise scoped limit well past
        # the 32 MiB default.
        return 8 << 20, 96 << 20
    if "v5" in kind:
        # 128 MiB physical but only 16 MiB scoped by default: modest tiles,
        # explicit limit so double-buffering actually fits.
        return 4 << 20, 64 << 20
    if "v4" in kind or "v3" in kind or "v2" in kind:
        return 2 << 20, 16 << 20
    # v7x / unknown: 64 MiB physical VMEM -> ~5 MiB blocks, <=48 MiB total.
    return 5 << 20, 48 << 20


def _choose_hw_tile(hw, c, itemsize, cap_bytes):
    """Spatial tile (multiple of 128) with (C, tile) block <= cap_bytes."""
    cap_elems = cap_bytes // max(1, c * itemsize)
    cap_elems = max(128, (cap_elems // 128) * 128)
    hw_ceil = ((hw + 127) // 128) * 128
    return min(cap_elems, hw_ceil)


def _cam_kernel(e_ref, w_ref, cam_b_ref, weff_ref, bc_ref,
                x_ref, xc_ref, sum_acc, max_acc,
                *, channels, hw_tile, hw_valid, inv_hw, use_vpu):
    # e_ref:     (1, C, hw_tile)  input features (spatial in lanes, native dtype)
    # w_ref:     (C, 1)  VMEM f32 original CAM weight (for x_class only)
    # cam_b_ref: (1,)    SMEM f32 CAM bias scalar
    # weff_ref:  (C, C)  VMEM     pre-folded conv weight (out, in)
    # bc_ref:    (C, 1)  VMEM f32 conv bias
    # x_ref:     (1, C, hw_tile)  feature output
    # xc_ref:    (1, 1, 2)        classification logits [x_a, x_m]
    # sum_acc / max_acc: (C, 1) f32 VMEM scratch, persist across spatial tiles
    j = pl.program_id(1)
    n_j = pl.num_programs(1)

    e = e_ref[0]                                       # (C, hw_tile), native dtype

    @pl.when(j == 0)
    def _():
        sum_acc[...] = jnp.zeros_like(sum_acc)
        max_acc[...] = jnp.full_like(max_acc, -jnp.inf)

    # --- global pooling (accumulate in f32); mask padded lanes if any ---
    if (hw_valid % hw_tile) != 0:
        lane = jax.lax.broadcasted_iota(jnp.int32, (channels, hw_tile), 1)
        valid = (j * hw_tile + lane) < hw_valid
        e32 = e.astype(jnp.float32)
        e_sum = jnp.where(valid, e32, 0.0)
        e_max = jnp.where(valid, e32, -jnp.inf)
    else:
        e_sum = e.astype(jnp.float32)
        e_max = e_sum

    sum_acc[...] = sum_acc[...] + jnp.sum(e_sum, axis=1, keepdims=True)
    max_acc[...] = jnp.maximum(max_acc[...], jnp.max(e_max, axis=1, keepdims=True))

    # --- 1x1 conv with pre-folded weight: y = W_eff @ e + b, LeakyReLU(0.2) ---
    if use_vpu:
        # Small C: column-broadcast MAC at full sublane/lane occupancy
        # (C ops on (C, hw_tile) tiles, not C^2 row ops).
        e32 = e.astype(jnp.float32)
        y = weff_ref[:, 0:1] * e32[0:1, :]
        for ci in range(1, channels):
            y = y + weff_ref[:, ci:ci + 1] * e32[ci:ci + 1, :]
    else:
        # Native-dtype operands into the MXU (bf16 stays bf16); f32 accumulate.
        y = jnp.dot(weff_ref[...], e, preferred_element_type=jnp.float32)
    y = y + bc_ref[...]
    y = jnp.maximum(y, 0.2 * y)                        # LeakyReLU(0.2)
    x_ref[0] = y.astype(x_ref.dtype)

    # --- finalize x_class on the last spatial tile (original weight + bias) ---
    @pl.when(j == n_j - 1)
    def _():
        bias = cam_b_ref[0]
        w = w_ref[...]                                 # (C, 1) f32
        x_a = jnp.sum(sum_acc[...] * w, axis=0, keepdims=True) * inv_hw + bias
        x_m = jnp.sum(max_acc[...] * w, axis=0, keepdims=True) + bias
        xc_ref[0] = jnp.concatenate([x_a, x_m], axis=1)    # (1, 2)


def cam_forward(e_nchw, weight, cam_bias, conv_w, conv_b):
    """CAM forward.

    e_nchw:   (B, C, H, W)
    weight:   (C, 1)        CAM weight
    cam_bias: (1,)          CAM bias
    conv_w:   (C, 2C, 1, 1) 1x1 conv weight (out, in, 1, 1)
    conv_b:   (C,)          1x1 conv bias
    returns:  x (B, C, H, W), x_class (B, 2)
    """
    B, C, H, W = e_nchw.shape
    HW = H * W
    out_dtype = e_nchw.dtype
    itemsize = jnp.dtype(out_dtype).itemsize

    cap_bytes, vmem_limit = _gen_caps()
    hw_tile = _choose_hw_tile(HW, C, itemsize, cap_bytes)
    n_hw = pl.cdiv(HW, hw_tile)
    hw_padded = n_hw * hw_tile
    pad = hw_padded - HW

    # NCHW-native: free reshape; pad the lane (spatial) dim if needed so every
    # block stays lane-dense and a multiple of 128.
    e = e_nchw.reshape(B, C, HW)
    if pad:
        e = jnp.pad(e, ((0, 0), (0, 0), (0, pad)))

    f32 = jnp.float32
    w_cam = weight.astype(f32).reshape(C, 1)
    bias = cam_bias.astype(f32).reshape(1)

    # Fold the channel rescale and the duplicated concat into the conv weight:
    #   conv1x1(cat([e*s, e*s])) == ((Wc[:, :C] + Wc[:, C:]) * s[None, :]) @ e + b
    scale = w_cam[:, 0] + bias[0]                          # (C,)
    wc = conv_w.reshape(C, 2 * C).astype(f32)              # (C_out, 2C_in)
    w_eff = (wc[:, :C] + wc[:, C:]) * scale[None, :]       # (C_out, C_in)
    bc = conv_b.astype(f32).reshape(C, 1)

    use_vpu = C < 8
    if (not use_vpu) and itemsize < 4:
        # Keep the MXU operands in the narrow native dtype (bf16 path).
        w_eff = w_eff.astype(out_dtype)

    kernel = functools.partial(_cam_kernel, channels=C, hw_tile=hw_tile,
                               hw_valid=HW, inv_hw=1.0 / HW, use_vpu=use_vpu)

    grid_spec = pltpu.PrefetchScalarGridSpec(
        num_scalar_prefetch=0,
        grid=(B, n_hw),
        in_specs=[
            pl.BlockSpec((1, C, hw_tile), lambda b, j: (b, 0, j)),
            pl.BlockSpec((C, 1), lambda b, j: (0, 0)),
            pl.BlockSpec(memory_space=pltpu.MemorySpace.SMEM),
            pl.BlockSpec((C, C), lambda b, j: (0, 0)),
            pl.BlockSpec((C, 1), lambda b, j: (0, 0)),
        ],
        out_specs=[
            pl.BlockSpec((1, C, hw_tile), lambda b, j: (b, 0, j)),
            pl.BlockSpec((1, 1, 2), lambda b, j: (b, 0, 0)),
        ],
        scratch_shapes=[
            pltpu.VMEM((C, 1), jnp.float32),   # running spatial sum
            pltpu.VMEM((C, 1), jnp.float32),   # running spatial max
        ],
    )

    # TODO(synk): for B == 1 on v7x, split the spatial axis into an outer
    # "parallel" dim with per-core partial sum/max outputs (finalized in the
    # wrapper) so the second TensorCore gets work.
    x_flat, x_class = pl.pallas_call(
        kernel,
        grid_spec=grid_spec,
        out_shape=(
            jax.ShapeDtypeStruct((B, C, hw_padded), out_dtype),
            jax.ShapeDtypeStruct((B, 1, 2), jnp.float32),
        ),
        compiler_params=pltpu.CompilerParams(
            # Batch axis parallel (megacore / v7x dual-TC); spatial axis carries
            # the pooling accumulators, so it must be "arbitrary".
            dimension_semantics=("parallel", "arbitrary"),
            vmem_limit_bytes=vmem_limit,
        ),
    )(e, w_cam, bias, w_eff, bc)

    x = x_flat[:, :, :HW].reshape(B, C, H, W)
    return x, x_class.reshape(B, 2)


def cam_reference(e_nchw, weight, cam_bias, conv_w, conv_b):
    """Float64 numpy reference mirroring the PyTorch forward exactly."""
    e = np.asarray(e_nchw, dtype=np.float64)
    w = np.asarray(weight, dtype=np.float64)                 # (C, 1)
    b = np.asarray(cam_bias, dtype=np.float64)               # (1,)
    C = w.shape[0]
    wc = np.asarray(conv_w, dtype=np.float64).reshape(C, 2 * C)
    cb = np.asarray(conv_b, dtype=np.float64)

    gap = e.mean(axis=(2, 3))                                # (B, C)
    gmp = e.max(axis=(2, 3))                                 # (B, C)
    x_a = gap @ w + b                                        # (B, 1)
    x_m = gmp @ w + b                                        # (B, 1)
    scale = (w[:, 0] + b[0]).reshape(1, C, 1, 1)
    x_cat = np.concatenate([e * scale, e * scale], axis=1)   # (B, 2C, H, W)
    y = np.einsum('bihw,oi->bohw', x_cat, wc) + cb.reshape(1, C, 1, 1)
    y = np.where(y >= 0, y, 0.2 * y)
    x_class = np.concatenate([x_a, x_m], axis=1)             # (B, 2)
    return y, x_class


def _make_params(key, C):
    k_w, k_cw, k_cb = jax.random.split(key, 3)
    bound = float(np.sqrt(6.0 / (C + 1)))                    # xavier_uniform (C,1)
    weight = jax.random.uniform(k_w, (C, 1), minval=-bound, maxval=bound,
                                dtype=jnp.float32)
    cam_bias = jnp.zeros((1,), dtype=jnp.float32)
    conv_bound = float(np.sqrt(1.0 / (2 * C)))
    conv_w = jax.random.uniform(k_cw, (C, 2 * C, 1, 1), minval=-conv_bound,
                                maxval=conv_bound, dtype=jnp.float32)
    conv_b = jax.random.uniform(k_cb, (C,), minval=-conv_bound,
                                maxval=conv_bound, dtype=jnp.float32)
    return weight, cam_bias, conv_w, conv_b


if __name__ == "__main__":
    key = jax.random.PRNGKey(0)

    # Test 1: small C (VPU column-broadcast path), HW multiple of 128.
    k1, k2, kp1, kp2 = jax.random.split(key, 4)
    B, C, H, W = 2, 4, 16, 16
    e1 = jax.random.normal(k1, (B, C, H, W), dtype=jnp.float32)
    p1 = _make_params(kp1, C)
    x1, xc1 = cam_forward(e1, *p1)
    jax.block_until_ready((x1, xc1))
    x1_ref, xc1_ref = cam_reference(e1, *p1)
    np.testing.assert_allclose(np.asarray(x1, np.float64), x1_ref,
                               rtol=1e-4, atol=1e-4)
    np.testing.assert_allclose(np.asarray(xc1, np.float64), xc1_ref,
                               rtol=1e-4, atol=1e-4)

    # Test 2: MXU path (C >= 8) with HW NOT a multiple of 128 (pad + mask path).
    B2, C2, H2, W2 = 2, 16, 10, 10
    e2 = jax.random.normal(k2, (B2, C2, H2, W2), dtype=jnp.float32)
    p2 = _make_params(kp2, C2)
    x2, xc2 = cam_forward(e2, *p2)
    jax.block_until_ready((x2, xc2))
    x2_ref, xc2_ref = cam_reference(e2, *p2)
    np.testing.assert_allclose(np.asarray(x2, np.float64), x2_ref,
                               rtol=1e-4, atol=1e-4)
    np.testing.assert_allclose(np.asarray(xc2, np.float64), xc2_ref,
                               rtol=1e-4, atol=1e-4)

    print("KERNEL_OK")
</pallas_src>

<mosaic_0001>
module attributes {stable_mosaic.version = 11 : i64} {
  func.func @_cam_kernel(%arg0: i32, %arg1: i32, %arg2: memref<1x4x256xf32, #tpu.memory_space<vmem>>, %arg3: memref<4x1xf32, #tpu.memory_space<vmem>>, %arg4: memref<1xf32, #tpu.memory_space<smem>>, %arg5: memref<4x4xf32, #tpu.memory_space<vmem>>, %arg6: memref<4x1xf32, #tpu.memory_space<vmem>>, %arg7: memref<1x4x256xf32, #tpu.memory_space<vmem>>, %arg8: memref<1x1x2xf32, #tpu.memory_space<vmem>>, %arg9: memref<4x1xf32, #tpu.memory_space<vmem>>, %arg10: memref<4x1xf32, #tpu.memory_space<vmem>>) attributes {dimension_semantics = [#tpu.dimension_semantics<parallel>, #tpu.dimension_semantics<arbitrary>], iteration_bounds = array<i64: 2, 1>, scalar_prefetch = 0 : i64, scratch_operands = 2 : i64, tpu.core_type = #tpu.core_type<tc>, window_params = [{transform_indices = @transform_0, window_bounds = array<i64: 1, 4, 256>}, {pipeline_mode = #tpu.pipeline_mode<synchronous>, transform_indices = @transform_1, window_bounds = array<i64: 4, 1>}, {transform_indices = @transform_2, window_bounds = array<i64: 1>}, {pipeline_mode = #tpu.pipeline_mode<synchronous>, transform_indices = @transform_3, window_bounds = array<i64: 4, 4>}, {pipeline_mode = #tpu.pipeline_mode<synchronous>, transform_indices = @transform_4, window_bounds = array<i64: 4, 1>}, {transform_indices = @transform_5, window_bounds = array<i64: 1, 4, 256>}, {transform_indices = @transform_6, window_bounds = array<i64: 1, 1, 2>}]} {
    %c0 = arith.constant 0 : index
    %c0_0 = arith.constant 0 : index
    %c0_1 = arith.constant 0 : index
    %0 = vector.load %arg2[%c0, %c0_0, %c0_1] : memref<1x4x256xf32, #tpu.memory_space<vmem>>, vector<1x4x256xf32>
    %1 = vector.shape_cast %0 : vector<1x4x256xf32> to vector<4x256xf32>
    %c0_i32 = arith.constant 0 : i32
    %2 = arith.cmpi eq, %arg1, %c0_i32 : i32
    %3 = arith.extui %2 : i1 to i32
    %c0_i32_2 = arith.constant 0 : i32
    %4 = arith.cmpi ne, %3, %c0_i32_2 : i32
    scf.if %4 {
      %cst_25 = arith.constant 0.000000e+00 : f32
      %50 = vector.broadcast %cst_25 : f32 to vector<4x1xf32>
      %c0_26 = arith.constant 0 : index
      %c0_27 = arith.constant 0 : index
      %51 = vector.load %arg9[%c0_26, %c0_27] : memref<4x1xf32, #tpu.memory_space<vmem>>, vector<4x1xf32>
      tpu.vector_store %arg9[%c0_26, %c0_27], %50 {strides = array<i32>} : memref<4x1xf32, #tpu.memory_space<vmem>>, vector<4x1xf32>,
      %cst_28 = arith.constant 0xFF800000 : f32
      %52 = vector.broadcast %cst_28 : f32 to vector<4x1xf32>
      %c0_29 = arith.constant 0 : index
      %c0_30 = arith.constant 0 : index
      %53 = vector.load %arg10[%c0_29, %c0_30] : memref<4x1xf32, #tpu.memory_space<vmem>>, vector<4x1xf32>
      tpu.vector_store %arg10[%c0_29, %c0_30], %52 {strides = array<i32>} : memref<4x1xf32, #tpu.memory_space<vmem>>, vector<4x1xf32>,
    } else {
    }
    %c0_3 = arith.constant 0 : index
    %c0_4 = arith.constant 0 : index
    %5 = vector.load %arg9[%c0_3, %c0_4] : memref<4x1xf32, #tpu.memory_space<vmem>>, vector<4x1xf32>
    %cst = arith.constant dense<0.000000e+00> : vector<4xf32>
    %6 = vector.multi_reduction <add>, %1, %cst [1] : vector<4x256xf32> to vector<4xf32>
    %7 = vector.shape_cast %6 : vector<4xf32> to vector<4x1xf32>
    %8 = arith.addf %5, %7 : vector<4x1xf32>
    %c0_5 = arith.constant 0 : index
    %c0_6 = arith.constant 0 : index
    %9 = vector.load %arg9[%c0_5, %c0_6] : memref<4x1xf32, #tpu.memory_space<vmem>>, vector<4x1xf32>
    tpu.vector_store %arg9[%c0_5, %c0_6], %8 {strides = array<i32>} : memref<4x1xf32, #tpu.memory_space<vmem>>, vector<4x1xf32>,
    %c0_7 = arith.constant 0 : index
    %c0_8 = arith.constant 0 : index
    %10 = vector.load %arg10[%c0_7, %c0_8] : memref<4x1xf32, #tpu.memory_space<vmem>>, vector<4x1xf32>
    %cst_9 = arith.constant dense<0xFF800000> : vector<4xf32>
    %11 = vector.multi_reduction <maximumf>, %1, %cst_9 [1] : vector<4x256xf32> to vector<4xf32>
    %12 = vector.shape_cast %11 : vector<4xf32> to vector<4x1xf32>
    %13 = arith.maximumf %10, %12 : vector<4x1xf32>
    %c0_10 = arith.constant 0 : index
    %c0_11 = arith.constant 0 : index
    %14 = vector.load %arg10[%c0_10, %c0_11] : memref<4x1xf32, #tpu.memory_space<vmem>>, vector<4x1xf32>
    tpu.vector_store %arg10[%c0_10, %c0_11], %13 {strides = array<i32>} : memref<4x1xf32, #tpu.memory_space<vmem>>, vector<4x1xf32>,
    %c0_12 = arith.constant 0 : index
    %c0_13 = arith.constant 0 : index
    %15 = vector.load %arg5[%c0_12, %c0_13] : memref<4x4xf32, #tpu.memory_space<vmem>>, vector<4x1xf32>
    %16 = vector.extract_strided_slice %1 {offsets = [0, 0], sizes = [1, 256], strides = [1, 1]} : vector<4x256xf32> to vector<1x256xf32>
    %17 = vector.broadcast %15 : vector<4x1xf32> to vector<4x256xf32>
    %18 = vector.broadcast %16 : vector<1x256xf32> to vector<4x256xf32>
    %19 = arith.mulf %17, %18 : vector<4x256xf32>
    %c0_14 = arith.constant 0 : index
    %c1 = arith.constant 1 : index
    %20 = vector.load %arg5[%c0_14, %c1] : memref<4x4xf32, #tpu.memory_space<vmem>>, vector<4x1xf32>
    %21 = vector.extract_strided_slice %1 {offsets = [1, 0], sizes = [1, 256], strides = [1, 1]} : vector<4x256xf32> to vector<1x256xf32>
    %22 = vector.broadcast %20 : vector<4x1xf32> to vector<4x256xf32>
    %23 = vector.broadcast %21 : vector<1x256xf32> to vector<4x256xf32>
    %24 = arith.mulf %22, %23 : vector<4x256xf32>
    %25 = arith.addf %19, %24 : vector<4x256xf32>
    %c0_15 = arith.constant 0 : index
    %c2 = arith.constant 2 : index
    %26 = vector.load %arg5[%c0_15, %c2] : memref<4x4xf32, #tpu.memory_space<vmem>>, vector<4x1xf32>
    %27 = vector.extract_strided_slice %1 {offsets = [2, 0], sizes = [1, 256], strides = [1, 1]} : vector<4x256xf32> to vector<1x256xf32>
    %28 = vector.broadcast %26 : vector<4x1xf32> to vector<4x256xf32>
    %29 = vector.broadcast %27 : vector<1x256xf32> to vector<4x256xf32>
    %30 = arith.mulf %28, %29 : vector<4x256xf32>
    %31 = arith.addf %25, %30 : vector<4x256xf32>
    %c0_16 = arith.constant 0 : index
    %c3 = arith.constant 3 : index
    %32 = vector.load %arg5[%c0_16, %c3] : memref<4x4xf32, #tpu.memory_space<vmem>>, vector<4x1xf32>
    %33 = vector.extract_strided_slice %1 {offsets = [3, 0], sizes = [1, 256], strides = [1, 1]} : vector<4x256xf32> to vector<1x256xf32>
    %34 = vector.broadcast %32 : vector<4x1xf32> to vector<4x256xf32>
    %35 = vector.broadcast %33 : vector<1x256xf32> to vector<4x256xf32>
    %36 = arith.mulf %34, %35 : vector<4x256xf32>
    %37 = arith.addf %31, %36 : vector<4x256xf32>
    %c0_17 = arith.constant 0 : index
    %c0_18 = arith.constant 0 : index
    %38 = vector.load %arg6[%c0_17, %c0_18] : memref<4x1xf32, #tpu.memory_space<vmem>>, vector<4x1xf32>
    %39 = vector.broadcast %38 : vector<4x1xf32> to vector<4x256xf32>
    %40 = arith.addf %37, %39 : vector<4x256xf32>
    %cst_19 = arith.constant 2.000000e-01 : f32
    %41 = vector.broadcast %cst_19 : f32 to vector<4x256xf32>
    %42 = arith.mulf %41, %40 : vector<4x256xf32>
    %43 = arith.maximumf %40, %42 : vector<4x256xf32>
    %c0_20 = arith.constant 0 : index
    %c0_21 = arith.constant 0 : index
    %c0_22 = arith.constant 0 : index
    %44 = vector.load %arg7[%c0_20, %c0_21, %c0_22] : memref<1x4x256xf32, #tpu.memory_space<vmem>>, vector<1x4x256xf32>
    %45 = vector.shape_cast %44 : vector<1x4x256xf32> to vector<4x256xf32>
    %46 = vector.shape_cast %43 : vector<4x256xf32> to vector<1x4x256xf32>
    tpu.vector_store %arg7[%c0_20, %c0_21, %c0_22], %46 {strides = array<i32>} : memref<1x4x256xf32, #tpu.memory_space<vmem>>, vector<1x4x256xf32>,
    %c0_i32_23 = arith.constant 0 : i32
    %47 = arith.cmpi eq, %arg1, %c0_i32_23 : i32
    %48 = arith.extui %47 : i1 to i32
    %c0_i32_24 = arith.constant 0 : i32
    %49 = arith.cmpi ne, %48, %c0_i32_24 : i32
    scf.if %49 {
      %c0_25 = arith.constant 0 : index
      %50 = memref.load %arg4[%c0_25] : memref<1xf32, #tpu.memory_space<smem>>
      %c0_26 = arith.constant 0 : index
      %c0_27 = arith.constant 0 : index
      %51 = vector.load %arg3[%c0_26, %c0_27] : memref<4x1xf32, #tpu.memory_space<vmem>>, vector<4x1xf32>
      %c0_28 = arith.constant 0 : index
      %c0_29 = arith.constant 0 : index
      %52 = vector.load %arg9[%c0_28, %c0_29] : memref<4x1xf32, #tpu.memory_space<vmem>>, vector<4x1xf32>
      %53 = arith.mulf %52, %51 : vector<4x1xf32>
      %cst_30 = arith.constant dense<0.000000e+00> : vector<1xf32>
      %54 = vector.multi_reduction <add>, %53, %cst_30 [0] : vector<4x1xf32> to vector<1xf32>
      %55 = vector.shape_cast %54 : vector<1xf32> to vector<1x1xf32>
      %cst_31 = arith.constant 3.906250e-03 : f32
      %56 = vector.broadcast %cst_31 : f32 to vector<1x1xf32>
      %57 = arith.mulf %55, %56 : vector<1x1xf32>
      %58 = vector.broadcast %50 : f32 to vector<1x1xf32>
      %59 = arith.addf %57, %58 : vector<1x1xf32>
      %c0_32 = arith.constant 0 : index
      %c0_33 = arith.constant 0 : index
      %60 = vector.load %arg10[%c0_32, %c0_33] : memref<4x1xf32, #tpu.memory_space<vmem>>, vector<4x1xf32>
      %61 = arith.mulf %60, %51 : vector<4x1xf32>
      %cst_34 = arith.constant dense<0.000000e+00> : vector<1xf32>
      %62 = vector.multi_reduction <add>, %61, %cst_34 [0] : vector<4x1xf32> to vector<1xf32>
      %63 = vector.shape_cast %62 : vector<1xf32> to vector<1x1xf32>
      %64 = vector.broadcast %50 : f32 to vector<1x1xf32>
      %65 = arith.addf %63, %64 : vector<1x1xf32>
      %66 = tpu.concatenate %59, %65 in 1 : vector<1x1xf32>, vector<1x1xf32> -> vector<1x2xf32>
      %c0_35 = arith.constant 0 : index
      %c0_36 = arith.constant 0 : index
      %c0_37 = arith.constant 0 : index
      %67 = vector.load %arg8[%c0_35, %c0_36, %c0_37] : memref<1x1x2xf32, #tpu.memory_space<vmem>>, vector<1x1x2xf32>
      %68 = vector.shape_cast %67 : vector<1x1x2xf32> to vector<1x2xf32>
      %69 = vector.shape_cast %66 : vector<1x2xf32> to vector<1x1x2xf32>
      tpu.vector_store %arg8[%c0_35, %c0_36, %c0_37], %69 {strides = array<i32>} : memref<1x1x2xf32, #tpu.memory_space<vmem>>, vector<1x1x2xf32>,
    } else {
    }
    return
  }
  func.func @transform_0(%arg0: i32, %arg1: i32) -> (i32, i32, i32) {
    %c0_i32 = arith.constant 0 : i32
    %c0_i32_0 = arith.constant 0 : i32
    return %arg0, %c0_i32, %arg1 : i32, i32, i32
  }
  func.func @transform_1(%arg0: i32, %arg1: i32) -> (i32, i32) {
    %c0_i32 = arith.constant 0 : i32
    %c0_i32_0 = arith.constant 0 : i32
    %c0_i32_1 = arith.constant 0 : i32
    return %c0_i32, %c0_i32_0 : i32, i32
  }
  func.func @transform_2(%arg0: i32, %arg1: i32) -> i32 {
    %c0_i32 = arith.constant 0 : i32
    %c0_i32_0 = arith.constant 0 : i32
    return %c0_i32 : i32
  }
  func.func @transform_3(%arg0: i32, %arg1: i32) -> (i32, i32) {
    %c0_i32 = arith.constant 0 : i32
    %c0_i32_0 = arith.constant 0 : i32
    %c0_i32_1 = arith.constant 0 : i32
    return %c0_i32, %c0_i32_0 : i32, i32
  }
  func.func @transform_4(%arg0: i32, %arg1: i32) -> (i32, i32) {
    %c0_i32 = arith.constant 0 : i32
    %c0_i32_0 = arith.constant 0 : i32
    %c0_i32_1 = arith.constant 0 : i32
    return %c0_i32, %c0_i32_0 : i32, i32
  }
  func.func @transform_5(%arg0: i32, %arg1: i32) -> (i32, i32, i32) {
    %c0_i32 = arith.constant 0 : i32
    %c0_i32_0 = arith.constant 0 : i32
    return %arg0, %c0_i32, %arg1 : i32, i32, i32
  }
  func.func @transform_6(%arg0: i32, %arg1: i32) -> (i32, i32, i32) {
    %c0_i32 = arith.constant 0 : i32
    %c0_i32_0 = arith.constant 0 : i32
    %c0_i32_1 = arith.constant 0 : i32
    return %arg0, %c0_i32, %c0_i32_0 : i32, i32, i32
  }
}

</mosaic_0001>

<llo_original>
// kernel: tpu_custom_call.1
$region0: #{tpu_custom_call.1}
  #allocation0 [shape = 'u32[]', space=smem, size = 0x4, offset = 0x4, fixed_abs, tag = 'smem constant byte address 0x4 - core index']
  #allocation1 [shape = 'u32[144,128]{1,0:T(1,128)}', space=vmem, size = 0x12000, scoped, tag = 'internal scratch']
  #allocation2 [shape = 'f32[4,1]{1,0:T(4,128)}', space=vmem, size = 0x800, scoped, tag = 'scratch operand']
  #allocation3 [shape = 'f32[4,1]{1,0:T(4,128)}', space=vmem, size = 0x800, scoped, tag = 'scratch operand']
  #allocation4 [shape = 'f32[1]{0:T(128)S(6)}', space=smem, size = 0x200, scoped, tag = 'scoped memory for tpu_custom_call.1']
  %s0 = inlined_call_operand.hbm [shape: f32[2,4,256], index: 0, kind: input, shape index: {}]
  %s1 = inlined_call_operand.vmem [shape: f32[4,1], index: 1, kind: input, shape index: {}]
  %s2 = inlined_call_operand.<no memory space> [shape: f32[1], index: 2, kind: input, shape index: {}]
  %s3 = inlined_call_operand.vmem [shape: f32[4,4], index: 3, kind: input, shape index: {}]
  %s4 = inlined_call_operand.vmem [shape: f32[4,1], index: 4, kind: input, shape index: {}]
  %s5 = inlined_call_operand.hbm [shape: f32[2,4,256], index: 5, kind: output, shape index: {0}]
  %s6 = inlined_call_operand.hbm [shape: f32[2,1,2], index: 6, kind: output, shape index: {1}]
  %7 = xla_tuple %s5, %s6
  %s8 = sld [smem:[#allocation0]]
  $region73: #{tpu_custom_call.1} parent=0
    _
  %s10 = ssub.s32 1, %s8
  %s11 = scalar_select 0, %s10, %s8
  %12 = sst [smem:[#allocation4]] %s2
  $region1: #{tpu_custom_call.1} parent=0
    #allocation5 [shape = 'u8[8192]{0}', space=vmem, size = 0x2000, scoped, tag = 'input window, operand 0']
    #allocation6 [shape = 's32[2]{0}', space=sflag, size = 0x8, scoped, tag = 'scoped memory for tpu_custom_call.1']
    #allocation7 [shape = 's32[2]{0}', space=sflag, size = 0x8, scoped, tag = 'scoped memory for tpu_custom_call.1']
    #allocation8 [shape = 'u8[8192]{0}', space=vmem, size = 0x2000, scoped, tag = 'output window, operand 0']
    #allocation9 [shape = 'u8[1024]{0}', space=vmem, size = 0x400, scoped, tag = 'output window, operand 1']
    #allocation10 [shape = 's32[2]{0}', space=sflag, size = 0x8, scoped, tag = 'scoped memory for tpu_custom_call.1']
    %13 = vsyncpa [#allocation6], 0
    %s14 = scalar_lea.sflag [#allocation6], 1
    %15 = vsyncpa %s14, 0
    %16 = vsyncpa [#allocation7], 0
    %s17 = scalar_lea.sflag [#allocation7], 1
    %18 = vsyncpa %s17, 0
    %19 = vsyncpa [#allocation10], 0
    %s20 = scalar_lea.sflag [#allocation10], 1
    %21 = vsyncpa %s20, 0
    loop: start=0, step=1, limit=4
    $region2: #{tpu_custom_call.1} parent=1 // loop_pre_header
      _
    $region3: #{tpu_custom_call.1} parent=1 // loop_header
      %s23 = sphi 0, %s27
      %p24 = scmp.ge.s32.totalorder %s23, 4
      %s30 = sphi 0, %s42
      %s31 = sphi 0, %s38
      %s32 = sphi 0, %s30
      %s33 = sphi 0, %s31
      %s34 = sphi 0, %s32
      %s35 = sphi 0, %s33
      %s47 = sphi 0, %s49
      %s50 = sphi 0, %s47
      %s51 = sphi 0, %s50
      %s67 = sphi 0, %s51
      %s71 = sphi 0, %s71
      %s73 = sphi 0, %s71
      %s74 = sphi 0, %s73
      %s88 = sphi 0, %s74
      %s92 = sphi 0, %s92
      %s94 = sphi 0, %s92
      %s95 = sphi 0, %s94
      %s109 = sphi 0, %s95
      %s113 = sphi 0, %s113
      %s115 = sphi 0, %s113
      %s116 = sphi 0, %s115
      %s130 = sphi 0, %s116
      %s134 = sphi 0, %s134
      %s136 = sphi 0, %s134
      %s137 = sphi 0, %s136
      %s151 = sphi 0, %s137
      %s159 = sphi 0, %s161
      %s162 = sphi 0, %s159
      %s163 = sphi 0, %s162
      %s179 = sphi 0, %s163
      %s185 = sphi 0, %s187
      %s188 = sphi 0, %s185
      %s189 = sphi 0, %s188
      %s205 = sphi 0, %s189
    $region4: #{tpu_custom_call.1} parent=1 // loop_header_branch
      %26 = sbr.rel (%p24) target = $region8
    $region5: #{tpu_custom_call.1} parent=1 // loop_body
      %s28 = ssub.s32 %s23, 1
      %s29 = ssub.s32 %s23, 2
      %s36 = sadd.s32 1, %s31
      %p37 = scmp.ge.s32.totalorder %s36, 1
      %s38 = scalar_select %p37, 0, %s36
      %s39 = sadd.s32 1, %s30
      %s40 = scalar_select %p37, %s39, %s30
      %p41 = scmp.ge.s32.totalorder %s40, 2
      %s42 = scalar_select %p41, 0, %s40
      %s43 = ssub.s32 %s30, %s42
      %s44 = ssub.s32 %s31, %s38
      %s45 = sor.u32 %s43, %s44
      %p46 = scmp.eq.s32.totalorder %s45, 0
      %s48 = sadd.s32 %s47, 1
      %s49 = scalar_select %p46, %s47, %s48
      %p52 = pneg %p46
      %p53 = scmp.eq.s32.totalorder %s23, 1
      %p54 = por %p52, %p53
      %p55 = scmp.ne.s32.totalorder %s47, %s50
      %p56 = scmp.eq.s32.totalorder %s23, 0
      %p57 = por %p55, %p56
      %p58 = scmp.ne.s32.totalorder %s47, %s50
      %p59 = scmp.eq.s32.totalorder %s28, 1
      %p60 = por %p58, %p59
      %p61 = scmp.ne.s32.totalorder %s50, %s51
      %p62 = scmp.eq.s32.totalorder %s28, 0
      %p63 = por %p61, %p62
      %p64 = scmp.ne.s32.totalorder %s50, %s51
      %p65 = scmp.eq.s32.totalorder %s29, 1
      %p66 = por %p64, %p65
      %p68 = scmp.ne.s32.totalorder %s51, %s67
      %p69 = scmp.eq.s32.totalorder %s29, 0
      %p70 = por %p68, %p69
      %s72 = sadd.s32 %s71, 1
      %p75 = scmp.eq.s32.totalorder %s23, 1
      %p76 = scmp.ne.s32.totalorder %s71, %s73
      %p77 = scmp.eq.s32.totalorder %s23, 0
      %p78 = por %p76, %p77
      %p79 = scmp.ne.s32.totalorder %s71, %s73
      %p80 = scmp.eq.s32.totalorder %s28, 1
      %p81 = por %p79, %p80
      %p82 = scmp.ne.s32.totalorder %s73, %s74
      %p83 = scmp.eq.s32.totalorder %s28, 0
      %p84 = por %p82, %p83
      %p85 = scmp.ne.s32.totalorder %s73, %s74
      %p86 = scmp.eq.s32.totalorder %s29, 1
      %p87 = por %p85, %p86
      %p89 = scmp.ne.s32.totalorder %s74, %s88
      %p90 = scmp.eq.s32.totalorder %s29, 0
      %p91 = por %p89, %p90
      %s93 = sadd.s32 %s92, 1
      %p96 = scmp.eq.s32.totalorder %s23, 1
      %p97 = scmp.ne.s32.totalorder %s92, %s94
      %p98 = scmp.eq.s32.totalorder %s23, 0
      %p99 = por %p97, %p98
      %p100 = scmp.ne.s32.totalorder %s92, %s94
      %p101 = scmp.eq.s32.totalorder %s28, 1
      %p102 = por %p100, %p101
      %p103 = scmp.ne.s32.totalorder %s94, %s95
      %p104 = scmp.eq.s32.totalorder %s28, 0
      %p105 = por %p103, %p104
      %p106 = scmp.ne.s32.totalorder %s94, %s95
      %p107 = scmp.eq.s32.totalorder %s29, 1
      %p108 = por %p106, %p107
      %p110 = scmp.ne.s32.totalorder %s95, %s109
      %p111 = scmp.eq.s32.totalorder %s29, 0
      %p112 = por %p110, %p111
      %s114 = sadd.s32 %s113, 1
      %p117 = scmp.eq.s32.totalorder %s23, 1
      %p118 = scmp.ne.s32.totalorder %s113, %s115
      %p119 = scmp.eq.s32.totalorder %s23, 0
      %p120 = por %p118, %p119
      %p121 = scmp.ne.s32.totalorder %s113, %s115
      %p122 = scmp.eq.s32.totalorder %s28, 1
      %p123 = por %p121, %p122
      %p124 = scmp.ne.s32.totalorder %s115, %s116
      %p125 = scmp.eq.s32.totalorder %s28, 0
      %p126 = por %p124, %p125
      %p127 = scmp.ne.s32.totalorder %s115, %s116
      %p128 = scmp.eq.s32.totalorder %s29, 1
      %p129 = por %p127, %p128
      %p131 = scmp.ne.s32.totalorder %s116, %s130
      %p132 = scmp.eq.s32.totalorder %s29, 0
      %p133 = por %p131, %p132
      %s135 = sadd.s32 %s134, 1
      %p138 = scmp.eq.s32.totalorder %s23, 1
      %p139 = scmp.ne.s32.totalorder %s134, %s136
      %p140 = scmp.eq.s32.totalorder %s23, 0
      %p141 = por %p139, %p140
      %p142 = scmp.ne.s32.totalorder %s134, %s136
      %p143 = scmp.eq.s32.totalorder %s28, 1
      %p144 = por %p142, %p143
      %p145 = scmp.ne.s32.totalorder %s136, %s137
      %p146 = scmp.eq.s32.totalorder %s28, 0
      %p147 = por %p145, %p146
      %p148 = scmp.ne.s32.totalorder %s136, %s137
      %p149 = scmp.eq.s32.totalorder %s29, 1
      %p150 = por %p148, %p149
      %p152 = scmp.ne.s32.totalorder %s137, %s151
      %p153 = scmp.eq.s32.totalorder %s29, 0
      %p154 = por %p152, %p153
      %s155 = ssub.s32 %s30, %s42
      %s156 = ssub.s32 %s31, %s38
      %s157 = sor.u32 %s155, %s156
      %p158 = scmp.eq.s32.totalorder %s157, 0
      %s160 = sadd.s32 %s159, 1
      %s161 = scalar_select %p158, %s159, %s160
      %p164 = pneg %p158
      %p165 = scmp.eq.s32.totalorder %s23, 1
      %p166 = por %p164, %p165
      %p167 = scmp.ne.s32.totalorder %s159, %s162
      %p168 = scmp.eq.s32.totalorder %s23, 0
      %p169 = por %p167, %p168
      %p170 = scmp.ne.s32.totalorder %s159, %s162
      %p171 = scmp.eq.s32.totalorder %s28, 1
      %p172 = por %p170, %p171
      %p173 = scmp.ne.s32.totalorder %s162, %s163
      %p174 = scmp.eq.s32.totalorder %s28, 0
      %p175 = por %p173, %p174
      %p176 = scmp.ne.s32.totalorder %s162, %s163
      %p177 = scmp.eq.s32.totalorder %s29, 1
      %p178 = por %p176, %p177
      %p180 = scmp.ne.s32.totalorder %s163, %s179
      %p181 = scmp.eq.s32.totalorder %s29, 0
      %p182 = por %p180, %p181
      %s183 = ssub.s32 %s30, %s42
      %p184 = scmp.eq.s32.totalorder %s183, 0
      %s186 = sadd.s32 %s185, 1
      %s187 = scalar_select %p184, %s185, %s186
      %p190 = pneg %p184
      %p191 = scmp.eq.s32.totalorder %s23, 1
      %p192 = por %p190, %p191
      %p193 = scmp.ne.s32.totalorder %s185, %s188
      %p194 = scmp.eq.s32.totalorder %s23, 0
      %p195 = por %p193, %p194
      %p196 = scmp.ne.s32.totalorder %s185, %s188
      %p197 = scmp.eq.s32.totalorder %s28, 1
      %p198 = por %p196, %p197
      %p199 = scmp.ne.s32.totalorder %s188, %s189
      %p200 = scmp.eq.s32.totalorder %s28, 0
      %p201 = por %p199, %p200
      %p202 = scmp.ne.s32.totalorder %s188, %s189
      %p203 = scmp.eq.s32.totalorder %s29, 1
      %p204 = por %p202, %p203
      %p206 = scmp.ne.s32.totalorder %s189, %s205
      %p207 = scmp.eq.s32.totalorder %s29, 0
      %p208 = por %p206, %p207
      %p209 = scmp.le.s32.totalorder 1, %s23
      %p210 = scmp.lt.s32.totalorder %s23, 3
      %p211 = pnand %p209, %p210
      %p212 = pneg %p211
      // Predicated region
      $region9: #{tpu_custom_call.1} parent=5 // pred_check
        _
      $region10: #{tpu_custom_call.1} parent=5 // pred_check_branch
        %214 = sbr.rel (%p211) target = $region12
      $region11: #{tpu_custom_call.1} parent=5 // pred_region
        %s215 = ssub.s32 %s23, 1
        // Predicated region
        $region13: #{tpu_custom_call.1} parent=11 // pred_check
          %p216 = pneg %p84
        $region14: #{tpu_custom_call.1} parent=11 // pred_check_branch
          %218 = sbr.rel (%p216) target = $region16
        $region15: #{tpu_custom_call.1} parent=11 // pred_region
          _
        $region16: #{tpu_custom_call.1} parent=11 // pred_fallthru
          _
        // Predicated region
        $region17: #{tpu_custom_call.1} parent=11 // pred_check
          %p219 = pneg %p105
        $region18: #{tpu_custom_call.1} parent=11 // pred_check_branch
          %221 = sbr.rel (%p219) target = $region20
        $region19: #{tpu_custom_call.1} parent=11 // pred_region
          _
        $region20: #{tpu_custom_call.1} parent=11 // pred_fallthru
          _
        // Predicated region
        $region21: #{tpu_custom_call.1} parent=11 // pred_check
          %p222 = pneg %p126
        $region22: #{tpu_custom_call.1} parent=11 // pred_check_branch
          %224 = sbr.rel (%p222) target = $region24
        $region23: #{tpu_custom_call.1} parent=11 // pred_region
          _
        $region24: #{tpu_custom_call.1} parent=11 // pred_fallthru
          _
        // Predicated region
        $region25: #{tpu_custom_call.1} parent=11 // pred_check
          %p225 = pneg %p147
        $region26: #{tpu_custom_call.1} parent=11 // pred_check_branch
          %227 = sbr.rel (%p225) target = $region28
        $region27: #{tpu_custom_call.1} parent=11 // pred_region
          _
        $region28: #{tpu_custom_call.1} parent=11 // pred_fallthru
          _
      $region12: #{tpu_custom_call.1} parent=5 // pred_fallthru
        _
      %p228 = scmp.lt.s32.totalorder %s23, 2
      // Predicated region
      $region29: #{tpu_custom_call.1} parent=5 // pred_check
        %p229 = pneg %p228
      $region30: #{tpu_custom_call.1} parent=5 // pred_check_branch
        %231 = sbr.rel (%p229) target = $region32
      $region31: #{tpu_custom_call.1} parent=5 // pred_region
        // Predicated region
        $region33: #{tpu_custom_call.1} parent=31 // pred_check
          %p232 = pneg %p57
        $region34: #{tpu_custom_call.1} parent=31 // pred_check_branch
          %234 = sbr.rel (%p232) target = $region36
        $region35: #{tpu_custom_call.1} parent=31 // pred_region
          %s235 = sand.u32 %s47, 1
          %s236 = scalar_lea.sflag [#allocation6], %s235
          %s237 = sand.u32 %s47, 1
          %s238 = smul.addr %s237, 8
          %s239 = scalar_lea.vmem [#allocation5], %s238
          %s240 = smul.u32 2, %s31
          %s242 = ssub.s32 128, 128
          %243 = vsyncadd %s236, %s242
          %s244 = smul.addr %s30, 2
          %s245 = sadd.s32 %s240, %s244
          %s246 = smul.addr %s245, 64
          %s247 = scalar_lea.hbm %s0, %s246
          %s249 = sshll.u32 %s239, 4
          %s250 = int_to_ptr.vmem [resolvable:$true] %s249
          %252 = dma.hbm_to_vmem [thread:$0]  %s247, 128, %s250, %s236
        $region36: #{tpu_custom_call.1} parent=31 // pred_fallthru
          _
      $region32: #{tpu_custom_call.1} parent=5 // pred_fallthru
        _
      %p253 = scmp.le.s32.totalorder 1, %s23
      %p254 = scmp.lt.s32.totalorder %s23, 3
      %p255 = pnand %p253, %p254
      %p256 = pneg %p255
      // Predicated region
      $region37: #{tpu_custom_call.1} parent=5 // pred_check
        _
      $region38: #{tpu_custom_call.1} parent=5 // pred_check_branch
        %258 = sbr.rel (%p255) target = $region40
      $region39: #{tpu_custom_call.1} parent=5 // pred_region
        %s259 = ssub.s32 %s23, 1
        %s260 = sand.u32 %s50, 1
        %s261 = scalar_lea.sflag [#allocation6], %s260
        %s262 = sand.u32 %s50, 1
        %s263 = smul.addr %s262, 8
        %s264 = scalar_lea.vmem [#allocation5], %s263
        // Predicated region
        $region41: #{tpu_custom_call.1} parent=39 // pred_check
          %p265 = pneg %p63
        $region42: #{tpu_custom_call.1} parent=39 // pred_check_branch
          %267 = sbr.rel (%p265) target = $region44
        $region43: #{tpu_custom_call.1} parent=39 // pred_region
          %268 = dma.done %s261, 128
        $region44: #{tpu_custom_call.1} parent=39 // pred_fallthru
          _
        %s269 = sand.u32 %s50, 1
        %s270 = scalar_lea.sflag [#allocation6], %s269
        %s271 = sand.u32 %s50, 1
        %s272 = smul.addr %s271, 8
        %s273 = scalar_lea.vmem [#allocation5], %s272
        %p274 = pneg %p63
        %p275 = pneg %p60
        %p276 = pneg %p84
        %p277 = pneg %p81
        %p278 = pneg %p105
        %p279 = pneg %p102
        %p280 = pneg %p126
        %p281 = pneg %p123
        %p282 = pneg %p147
        %p283 = pneg %p144
        %p284 = pneg %p175
        %p285 = pneg %p172
        %s286 = sand.u32 %s162, 1
        %s287 = scalar_lea.sflag [#allocation7], %s286
        %s288 = sand.u32 %s162, 1
        %s289 = smul.addr %s288, 8
        %s290 = scalar_lea.vmem [#allocation8], %s289
        %p291 = pneg %p201
        %p292 = pneg %p198
        %s293 = sand.u32 %s188, 1
        %s294 = scalar_lea.sflag [#allocation10], %s293
        %s295 = sand.u32 %s188, 1
        %s296 = scalar_lea.vmem [#allocation9], %s295
        %s297 = smul.u32 2, %s33
        %s298 = smul.u32 2, %s33
        %v299 = vld [vmem:[%s264] sm:$0xff]
        %p300 = scmp.eq.s32.totalorder %s33, 0
        // Predicated region
        $region45: #{tpu_custom_call.1} parent=39 // pred_check
          %p301 = pneg %p300
        $region46: #{tpu_custom_call.1} parent=39 // pred_check_branch
          %303 = sbr.rel (%p301) target = $region48
        $region47: #{tpu_custom_call.1} parent=39 // pred_region
          %vm304 = vcmask 3072
          %305 = vst.msk [vmem:[#allocation2] sm:$0xf] %vm304, 0.0
          %306 = vst.msk [vmem:[#allocation3] sm:$0xf] %vm304, -inf
        $region48: #{tpu_custom_call.1} parent=39 // pred_fallthru
          _
        %v307 = vld [vmem:[#allocation2] sm:$0xf]
        %v309 = vcombine.high %v299, %v299
        %vm311 = vcmask 1043456
        %v312 = vsel %vm311, %v299, 0.0
        %v313 = vsel %vm311, %v309, 0.0
        %v314 = vadd.f32 %v312, %v313
        %315 = vadd.xlane.f32.xlu0 %v314
        %v316 = vpop.xlane.xlu0 %315
        %v317 = vadd.f32 %v307, %v316
        %vm318 = vcmask 3072
        %319 = vst.msk [vmem:[#allocation2] sm:$0xf] %vm318, %v317
        %v320 = vld [vmem:[#allocation3] sm:$0xf]
        %v321 = vsel %vm311, %v299, -inf
        %v322 = vsel %vm311, %v309, -inf
        %v323 = vmax.f32 %v321, %v322
        %324 = vmax.xlane.f32.xlu0 %v323
        %v325 = vpop.xlane.xlu0 %324
        %v326 = vmax.f32 %v320, %v325
        %327 = vst.msk [vmem:[#allocation3] sm:$0xf] %vm318, %v326
        %v328 = vld [vmem:[%s3] sm:$0xf]
        %330 = vset.pattern.permute.xlu0 0
        %331 = vperm.xlu0 %330, %v328
        %v332 = vpop.permute.xlu0 %331
        %v334 = vlaneseq
        %v335 = vshrl.u32 %v334, 7
        %v336 = vsub.s32 0, %v335
        %v337 = vrot.slane %v299, %v336
        %v338 = vlaneseq
        %v339 = vshrl.u32 %v338, 7
        %v340 = vsub.s32 4, %v339
        %v341 = vrot.slane %v299, %v340
        %v344 = vlaneseq
        %v345 = vshrl.u32 %v344, 7
        %v346 = vsub.s32 0, %v345
        %v347 = vrot.slane %v337, %v346
        %v348 = vlaneseq
        %v349 = vshrl.u32 %v348, 7
        %v350 = vsub.s32 0, %v349
        %v351 = vrot.slane %v341, %v350
        %v352 = vmul.f32 %v332, %v347
        %v353 = vmul.f32 %v332, %v351
        %354 = vset.pattern.permute.xlu0 1
        %355 = vperm.xlu0 %354, %v328
        %v356 = vpop.permute.xlu0 %355
        %v358 = vlaneseq
        %v359 = vshrl.u32 %v358, 7
        %v360 = vsub.s32 1, %v359
        %v361 = vrot.slane %v299, %v360
        %v362 = vlaneseq
        %v363 = vshrl.u32 %v362, 7
        %v364 = vsub.s32 5, %v363
        %v365 = vrot.slane %v299, %v364
        %v368 = vlaneseq
        %v369 = vshrl.u32 %v368, 7
        %v370 = vsub.s32 1, %v369
        %v371 = vrot.slane %v361, %v370
        %v372 = vlaneseq
        %v373 = vshrl.u32 %v372, 7
        %v374 = vsub.s32 1, %v373
        %v375 = vrot.slane %v365, %v374
        %v376 = vmul.f32 %v356, %v371
        %v377 = vmul.f32 %v356, %v375
        %v378 = vadd.f32 %v352, %v376
        %v379 = vadd.f32 %v353, %v377
        %380 = vset.pattern.permute.xlu0 2
        %381 = vperm.xlu0 %380, %v328
        %v382 = vpop.permute.xlu0 %381
        %v384 = vlaneseq
        %v385 = vshrl.u32 %v384, 7
        %v386 = vsub.s32 2, %v385
        %v387 = vrot.slane %v299, %v386
        %v388 = vlaneseq
        %v389 = vshrl.u32 %v388, 7
        %v390 = vsub.s32 6, %v389
        %v391 = vrot.slane %v299, %v390
        %v394 = vlaneseq
        %v395 = vshrl.u32 %v394, 7
        %v396 = vsub.s32 2, %v395
        %v397 = vrot.slane %v387, %v396
        %v398 = vlaneseq
        %v399 = vshrl.u32 %v398, 7
        %v400 = vsub.s32 2, %v399
        %v401 = vrot.slane %v391, %v400
        %v402 = vmul.f32 %v382, %v397
        %v403 = vmul.f32 %v382, %v401
        %v404 = vadd.f32 %v378, %v402
        %v405 = vadd.f32 %v379, %v403
        %406 = vset.pattern.permute.xlu0 3
        %407 = vperm.xlu0 %406, %v328
        %v408 = vpop.permute.xlu0 %407
        %v410 = vlaneseq
        %v411 = vshrl.u32 %v410, 7
        %v412 = vsub.s32 3, %v411
        %v413 = vrot.slane %v299, %v412
        %v414 = vlaneseq
        %v415 = vshrl.u32 %v414, 7
        %v416 = vsub.s32 7, %v415
        %v417 = vrot.slane %v299, %v416
        %v420 = vlaneseq
        %v421 = vshrl.u32 %v420, 7
        %v422 = vsub.s32 3, %v421
        %v423 = vrot.slane %v413, %v422
        %v424 = vlaneseq
        %v425 = vshrl.u32 %v424, 7
        %v426 = vsub.s32 3, %v425
        %v427 = vrot.slane %v417, %v426
        %v428 = vmul.f32 %v408, %v423
        %v429 = vmul.f32 %v408, %v427
        %v430 = vadd.f32 %v404, %v428
        %v431 = vadd.f32 %v405, %v429
        %v432 = vld [vmem:[%s4] sm:$0xf]
        %434 = vset.pattern.permute.xlu0 0
        %435 = vperm.xlu0 %434, %v432
        %v436 = vpop.permute.xlu0 %435
        %v438 = vadd.f32 %v430, %v436
        %v439 = vadd.f32 %v431, %v436
        %v440 = vmul.f32 %v438, 0.2
        %v441 = vmul.f32 %v439, 0.2
        %v442 = vmax.f32 %v438, %v440
        %v443 = vmax.f32 %v439, %v441
        %v446 = vcombine.low %v442, %v443
        %448 = vst [vmem:[%s290] sm:$0xff] %v446
        // Predicated region
        $region49: #{tpu_custom_call.1} parent=39 // pred_check
          %p449 = pneg %p300
        $region50: #{tpu_custom_call.1} parent=39 // pred_check_branch
          %451 = sbr.rel (%p449) target = $region52
        $region51: #{tpu_custom_call.1} parent=39 // pred_region
          %s452 = sld [smem:[#allocation4]]
          %v453 = vld [vmem:[%s1] sm:$0xf]
          %v454 = vld [vmem:[#allocation2] sm:$0xf]
          %v455 = vmul.f32 %v454, %v453
          %v456 = vsel %vm318, %v455, 0.0
          %v457 = vrot.slane %v456, 4
          %v458 = vadd.f32 %v456, %v457
          %v459 = vrot.slane %v458, 2
          %v460 = vadd.f32 %v458, %v459
          %v461 = vrot.slane %v460, 1
          %v462 = vadd.f32 %v460, %v461
          %v463 = vmul.f32 %v462, 0.00390625
          %v464 = vstv %s452
          %v465 = vadd.f32 %v463, %v464
          %v466 = vld [vmem:[#allocation3] sm:$0xf]
          %v467 = vmul.f32 %v466, %v453
          %v468 = vsel %vm318, %v467, 0.0
          %v469 = vrot.slane %v468, 4
          %v470 = vadd.f32 %v468, %v469
          %v471 = vrot.slane %v470, 2
          %v472 = vadd.f32 %v470, %v471
          %v473 = vrot.slane %v472, 1
          %v474 = vadd.f32 %v472, %v473
          %v475 = vadd.f32 %v474, %v464
          %477 = vrot.lane.b32.xlu0 %v475, 1
          %v478 = vpop.permute.xlu0 %477
          %vm480 = vcmask 7168
          %v481 = vsel %vm480, %v465, %v478
          %vm482 = vcmask 8192
          %483 = vst.msk [vmem:[%s296] sm:$0x1] %vm482, %v481
        $region52: #{tpu_custom_call.1} parent=39 // pred_fallthru
          _
        %s484 = sand.u32 %s162, 1
        %s485 = scalar_lea.sflag [#allocation7], %s484
        %s486 = sand.u32 %s162, 1
        %s487 = smul.addr %s486, 8
        %s488 = scalar_lea.vmem [#allocation8], %s487
        %s489 = sand.u32 %s188, 1
        %s490 = scalar_lea.sflag [#allocation10], %s489
        %s491 = sand.u32 %s188, 1
        %s492 = scalar_lea.vmem [#allocation9], %s491
        // Predicated region
        $region53: #{tpu_custom_call.1} parent=39 // pred_check
          %p493 = pneg %p172
        $region54: #{tpu_custom_call.1} parent=39 // pred_check_branch
          %495 = sbr.rel (%p493) target = $region56
        $region55: #{tpu_custom_call.1} parent=39 // pred_region
          %s496 = smul.u32 2, %s33
          %s498 = ssub.s32 128, 128
          %499 = vsyncadd %s485, %s498
          %s500 = smul.addr %s32, 2
          %s501 = sadd.s32 %s496, %s500
          %s502 = smul.addr %s501, 64
          %s503 = scalar_lea.hbm %s5, %s502
          %s505 = sshll.u32 %s488, 4
          %s506 = int_to_ptr.vmem [resolvable:$true] %s505
          %508 = dma.vmem_to_hbm [thread:$0]  %s506, 128, %s503, %s485
        $region56: #{tpu_custom_call.1} parent=39 // pred_fallthru
          _
        // Predicated region
        $region57: #{tpu_custom_call.1} parent=39 // pred_check
          %p509 = pneg %p198
        $region58: #{tpu_custom_call.1} parent=39 // pred_check_branch
          %511 = sbr.rel (%p509) target = $region60
        $region59: #{tpu_custom_call.1} parent=39 // pred_region
          %s513 = ssub.s32 16, 16
          %514 = vsyncadd %s490, %s513
          %s515 = smul.addr %s32, 16
          %s516 = scalar_lea.hbm %s6, %s515
          %s518 = sshll.u32 %s492, 4
          %s519 = int_to_ptr.vmem [resolvable:$true] %s518
          %521 = dma.vmem_to_hbm [thread:$0]  %s519, 16, %s516, %s490
        $region60: #{tpu_custom_call.1} parent=39 // pred_fallthru
          _
      $region40: #{tpu_custom_call.1} parent=5 // pred_fallthru
        _
      %p522 = scmp.le.s32.totalorder 2, %s23
      // Predicated region
      $region61: #{tpu_custom_call.1} parent=5 // pred_check
        %p523 = pneg %p522
      $region62: #{tpu_custom_call.1} parent=5 // pred_check_branch
        %525 = sbr.rel (%p523) target = $region64
      $region63: #{tpu_custom_call.1} parent=5 // pred_region
        %s526 = ssub.s32 %s23, 2
        // Predicated region
        $region65: #{tpu_custom_call.1} parent=63 // pred_check
          %p527 = pneg %p178
        $region66: #{tpu_custom_call.1} parent=63 // pred_check_branch
          %529 = sbr.rel (%p527) target = $region68
        $region67: #{tpu_custom_call.1} parent=63 // pred_region
          %s530 = sand.u32 %s163, 1
          %s531 = scalar_lea.sflag [#allocation7], %s530
          %s532 = sand.u32 %s163, 1
          %s533 = smul.addr %s532, 8
          %s534 = scalar_lea.vmem [#allocation8], %s533
          %535 = dma.done %s531, 128
        $region68: #{tpu_custom_call.1} parent=63 // pred_fallthru
          _
        // Predicated region
        $region69: #{tpu_custom_call.1} parent=63 // pred_check
          %p536 = pneg %p204
        $region70: #{tpu_custom_call.1} parent=63 // pred_check_branch
          %538 = sbr.rel (%p536) target = $region72
        $region71: #{tpu_custom_call.1} parent=63 // pred_region
          %s539 = sand.u32 %s189, 1
          %s540 = scalar_lea.sflag [#allocation10], %s539
          %s541 = sand.u32 %s189, 1
          %s542 = scalar_lea.vmem [#allocation9], %s541
          %543 = dma.done %s540, 16
        $region72: #{tpu_custom_call.1} parent=63 // pred_fallthru
          _
      $region64: #{tpu_custom_call.1} parent=5 // pred_fallthru
        _
    $region6: #{tpu_custom_call.1} parent=1 // loop_footer
      %s27 = sadd.s32 1, %s23
    $region7: #{tpu_custom_call.1} parent=1 // loop_footer_branch
      %22 = sbr.rel target = $region3
    $region8: #{tpu_custom_call.1} parent=1 // loop_exit
      _
    %544 = vsyncpa [#allocation6], 1
    %s545 = scalar_lea.sflag [#allocation6], 1
    %546 = vsyncpa %s545, 1
    %547 = vsyncpa [#allocation7], 1
    %s548 = scalar_lea.sflag [#allocation7], 1
    %549 = vsyncpa %s548, 1
    %550 = vsyncpa [#allocation10], 1
    %s551 = scalar_lea.sflag [#allocation10], 1
    %552 = vsyncpa %s551, 1

</llo_original>
